<compile_context>
chip_gen: v6e
topology: v6e:2x2x1
jax: 0.10.0
libtpu: 0.0.40
codegen_flags: <defaults>
</compile_context>

<pallas_src>
import jax
import jax.numpy as jnp
from jax.experimental import pallas as pl
from jax.experimental.pallas import tpu as pltpu

GAMMA = 2.0      # BinaryFocalLoss(gamma=2, ...)
ALPHA = 0.5      # BinaryFocalLoss(..., alpha=0.5)
_LANE = 128
_TR_MAX = 1024   # rows of 128 anchors per grid step (~2.5 MiB/input/step in f32)
_NCORES = 2      # leading "parallel" grid axis (megacore on v7x, loop elsewhere)
_NQ = 10         # number of accumulated quantities


def _focal_loss_kernel(pred_ref, lab_ref, acc_ref):
    """One (5, TR, 128) tile -> accumulate 10 per-slab partial sums.

    acc_ref is the resident (80, 128) VMEM output block for this core; quantity
    k occupies rows [8k, 8k+8):
      0: focal-loss sum over positive anchors
      1: focal-loss sum over negative anchors
      2..5: smooth-L1 sums over positive anchors (regression channels 1..4)
      6: # positive anchors          7: # negative anchors
      8: # positives with prob>=0.5  9: # negatives with prob<0.5
    """
    step = pl.program_id(1)

    @pl.when(step == 0)
    def _init():
        acc_ref[...] = jnp.zeros_like(acc_ref)

    score = pred_ref[0]                  # (TR, 128) f32
    t0 = lab_ref[0]                      # (TR, 128) f32
    pos = t0 > 0.5
    neg = t0 < -0.5
    valid = pos | neg
    pos_f = pos.astype(jnp.float32)
    neg_f = neg.astype(jnp.float32)

    # sigmoid (f32-safe at extreme logits: exp overflow -> prob == 0/1, no NaN)
    prob = 1.0 / (1.0 + jnp.exp(-score))

    # Merged pos/neg focal branch (masks are disjoint) -> one log per element.
    t_eff = jnp.where(pos, t0, t0 + 1.0)        # pos: target = t0; neg: t0 + 1
    t_eff = jnp.where(valid, t_eff, 0.5)        # ignored anchors: harmless value
    pt = prob * t_eff + (1.0 - prob) * (1.0 - t_eff)
    pt = jnp.where(valid, pt, 1.0)              # off-mask -> log(1) = 0
    log_pt = jnp.log(jnp.maximum(pt, 1e-37))    # clamp (a la torch BCE -100 clamp)
    at = (1.0 - ALPHA) * t_eff + ALPHA * (1.0 - t_eff)
    q = 1.0 - pt
    focal = -(q * q) * log_pt * at              # gamma == 2 -> q*q, no float pow

    tr = score.shape[0]

    def _accum(k, x):                           # x: (TR, 128) f32
        # (TR,128) -> (8,128) slab with pure VPU adds (tile-aligned, no XLU).
        slab = x.reshape(tr // 8, 8, _LANE).sum(axis=0)
        acc_ref[k * 8:(k + 1) * 8, :] += slab

    _accum(0, focal * pos_f)
    _accum(1, focal * neg_f)

    # SmoothL1 (beta=1) sums over positive anchors, regression channels 1..4.
    for j in range(4):
        d = pred_ref[j + 1] - lab_ref[j + 1]
        ad = jnp.abs(d)
        sl1 = jnp.where(ad < 1.0, 0.5 * d * d, ad - 0.5)
        _accum(2 + j, sl1 * pos_f)

    _accum(6, pos_f)
    _accum(7, neg_f)
    pred_pos = score >= 0.0                     # equivalent to prob >= 0.5
    _accum(8, (pos & pred_pos).astype(jnp.float32))
    _accum(9, (neg & jnp.logical_not(pred_pos)).astype(jnp.float32))


def _round_up(x, m):
    return -(-x // m) * m


def focal_loss(output, labels, num_hard=0, train=True):
    """Mirrors FocalLoss(num_hard=0).forward(output, labels, train)."""
    del num_hard, train  # num_hard == 0 path only (see TODO above)

    pred = output.reshape(-1, 5).astype(jnp.float32)   # (N, 5)
    lab = labels.reshape(-1, 5).astype(jnp.float32)    # (N, 5)
    n = pred.shape[0]

    rows = _round_up(n, _LANE) // _LANE
    tr = min(_TR_MAX, _round_up(max(1, -(-rows // _NCORES)), 8))
    rows_pad = _round_up(rows, _NCORES * tr)
    steps = rows_pad // (_NCORES * tr)
    n_pad = rows_pad * _LANE

    if n_pad != n:
        # Label channel-0 pads with 0 -> padded anchors are neither pos nor neg.
        pred = jnp.pad(pred, ((0, n_pad - n), (0, 0)))
        lab = jnp.pad(lab, ((0, n_pad - n), (0, 0)))

    # Channel-major, lane-dense layout (one extra HBM pass of XLA glue; ideally
    # the producing head would emit (5, N) directly).
    pred_cm = jnp.transpose(pred).reshape(5, rows_pad, _LANE)
    lab_cm = jnp.transpose(lab).reshape(5, rows_pad, _LANE)

    acc = pl.pallas_call(
        _focal_loss_kernel,
        out_shape=jax.ShapeDtypeStruct((_NCORES * _NQ * 8, _LANE), jnp.float32),
        grid_spec=pltpu.PrefetchScalarGridSpec(
            num_scalar_prefetch=0,
            grid=(_NCORES, steps),
            in_specs=[
                pl.BlockSpec((5, tr, _LANE), lambda c, i: (0, c * steps + i, 0)),
                pl.BlockSpec((5, tr, _LANE), lambda c, i: (0, c * steps + i, 0)),
            ],
            out_specs=pl.BlockSpec((_NQ * 8, _LANE), lambda c, i: (c, 0)),
        ),
        compiler_params=pltpu.CompilerParams(
            dimension_semantics=("parallel", "arbitrary"),
            vmem_limit_bytes=32 * 1024 * 1024,
        ),
    )(pred_cm, lab_cm)

    # Final tiny reduction: (2*80, 128) -> (10,)
    sums = acc.reshape(_NCORES, _NQ, 8, _LANE).sum(axis=(0, 2, 3))

    pos_sum, neg_sum = sums[0], sums[1]
    reg_sums = sums[2:6]
    n_pos, n_neg = sums[6], sums[7]
    pos_correct, neg_correct = sums[8], sums[9]

    # classify_loss = (pos_focal_sum + neg_focal_sum) / (n_pos + n_neg)
    # (reduces to neg_sum / n_neg when there are no positives, matching torch)
    classify_loss = (pos_sum + neg_sum) / (n_pos + n_neg)

    has_pos = n_pos > 0
    reg_means = jnp.where(has_pos, reg_sums / jnp.maximum(n_pos, 1.0), 0.0)

    loss = classify_loss + jnp.sum(reg_means)

    return [
        loss,
        classify_loss,
        reg_means[0], reg_means[1], reg_means[2], reg_means[3],
        pos_correct.astype(jnp.int32),
        n_pos.astype(jnp.int32),
        neg_correct.astype(jnp.int32),
        n_neg.astype(jnp.int32),
    ]


def _focal_loss_ref(output, labels):
    """Pure-JAX reference (mask formulation of the torch module)."""
    o = output.reshape(-1, 5).astype(jnp.float32)
    l = labels.reshape(-1, 5).astype(jnp.float32)
    t0 = l[:, 0]
    pos = t0 > 0.5
    neg = t0 < -0.5
    p = jax.nn.sigmoid(o[:, 0])

    def focal_sum(prob, tgt, mask):
        pt = prob * tgt + (1 - prob) * (1 - tgt)
        at = (1 - ALPHA) * tgt + ALPHA * (1 - tgt)
        pt = jnp.where(mask, pt, 1.0)
        return jnp.sum(jnp.where(mask, -((1 - pt) ** GAMMA) * jnp.log(pt) * at, 0.0))

    pos_sum = focal_sum(p, t0, pos)
    neg_sum = focal_sum(p, t0 + 1.0, neg)
    n_pos = jnp.sum(pos.astype(jnp.float32))
    n_neg = jnp.sum(neg.astype(jnp.float32))
    classify = (pos_sum + neg_sum) / (n_pos + n_neg)

    d = o[:, 1:5] - l[:, 1:5]
    ad = jnp.abs(d)
    sl1 = jnp.where(ad < 1.0, 0.5 * d * d, ad - 0.5)
    reg = jnp.sum(sl1 * pos[:, None].astype(jnp.float32), axis=0) / jnp.maximum(n_pos, 1.0)
    reg = jnp.where(n_pos > 0, reg, 0.0)
    counts = (jnp.sum(pos & (p >= 0.5)), jnp.sum(pos),
              jnp.sum(neg & (p < 0.5)), jnp.sum(neg))
    return classify + jnp.sum(reg), classify, reg, counts


if __name__ == "__main__":
    key = jax.random.PRNGKey(0)
    k1, k2, k3 = jax.random.split(key, 3)

    # Detection-head style output: (batch, D, H, W, anchors, 5) -> N = 384 anchors
    shape = (2, 4, 4, 4, 3, 5)
    output = jax.random.normal(k1, shape, dtype=jnp.float32)

    cls_target = jax.random.randint(k2, shape[:-1], -1, 2).astype(jnp.float32)  # {-1,0,1}
    reg_target = jax.random.normal(k3, shape[:-1] + (4,), dtype=jnp.float32)
    labels = jnp.concatenate([cls_target[..., None], reg_target], axis=-1)

    result = focal_loss(output, labels)
    result = [jax.block_until_ready(r) for r in result]

    # light correctness check against a pure-JAX reference
    ref_loss, ref_cls, ref_reg, ref_counts = _focal_loss_ref(output, labels)
    assert jnp.allclose(result[0], ref_loss, rtol=1e-3, atol=1e-4), (result[0], ref_loss)
    assert jnp.allclose(result[1], ref_cls, rtol=1e-3, atol=1e-4)
    for j in range(4):
        assert jnp.allclose(result[2 + j], ref_reg[j], rtol=1e-3, atol=1e-4)
    assert int(result[6]) == int(ref_counts[0])
    assert int(result[7]) == int(ref_counts[1])
    assert int(result[8]) == int(ref_counts[2])
    assert int(result[9]) == int(ref_counts[3])
    assert bool(jnp.isfinite(result[0]))

    print("KERNEL_OK")
</pallas_src>

<mosaic_0001>
module attributes {stable_mosaic.version = 11 : i64} {
  func.func @_focal_loss_kernel(%arg0: i32, %arg1: i32, %arg2: memref<5x8x128xf32, #tpu.memory_space<vmem>>, %arg3: memref<5x8x128xf32, #tpu.memory_space<vmem>>, %arg4: memref<80x128xf32, #tpu.memory_space<vmem>>) attributes {dimension_semantics = [#tpu.dimension_semantics<parallel>, #tpu.dimension_semantics<arbitrary>], iteration_bounds = array<i64: 2, 1>, scalar_prefetch = 0 : i64, scratch_operands = 0 : i64, tpu.core_type = #tpu.core_type<tc>, window_params = [{transform_indices = @transform_0, window_bounds = array<i64: 5, 8, 128>}, {transform_indices = @transform_1, window_bounds = array<i64: 5, 8, 128>}, {transform_indices = @transform_2, window_bounds = array<i64: 80, 128>}]} {
    %c0_i32 = arith.constant 0 : i32
    %0 = arith.cmpi eq, %arg1, %c0_i32 : i32
    %1 = arith.extui %0 : i1 to i32
    %c0_i32_0 = arith.constant 0 : i32
    %2 = arith.cmpi ne, %1, %c0_i32_0 : i32
    scf.if %2 {
      %cst_96 = arith.constant 0.000000e+00 : f32
      %175 = vector.broadcast %cst_96 : f32 to vector<80x128xf32>
      %c0_97 = arith.constant 0 : index
      %c0_98 = arith.constant 0 : index
      %176 = vector.load %arg4[%c0_97, %c0_98] : memref<80x128xf32, #tpu.memory_space<vmem>>, vector<80x128xf32>
      tpu.vector_store %arg4[%c0_97, %c0_98], %175 {strides = array<i32>} : memref<80x128xf32, #tpu.memory_space<vmem>>, vector<80x128xf32>,
    } else {
    }
    %c0 = arith.constant 0 : index
    %c0_1 = arith.constant 0 : index
    %c0_2 = arith.constant 0 : index
    %3 = vector.load %arg2[%c0, %c0_1, %c0_2] : memref<5x8x128xf32, #tpu.memory_space<vmem>>, vector<1x8x128xf32>
    %4 = vector.shape_cast %3 : vector<1x8x128xf32> to vector<8x128xf32>
    %c0_3 = arith.constant 0 : index
    %c0_4 = arith.constant 0 : index
    %c0_5 = arith.constant 0 : index
    %5 = vector.load %arg3[%c0_3, %c0_4, %c0_5] : memref<5x8x128xf32, #tpu.memory_space<vmem>>, vector<1x8x128xf32>
    %6 = vector.shape_cast %5 : vector<1x8x128xf32> to vector<8x128xf32>
    %cst = arith.constant 5.000000e-01 : f32
    %7 = vector.broadcast %cst : f32 to vector<8x128xf32>
    %8 = arith.cmpf ogt, %6, %7 : vector<8x128xf32>
    %cst_6 = arith.constant -5.000000e-01 : f32
    %9 = vector.broadcast %cst_6 : f32 to vector<8x128xf32>
    %10 = arith.cmpf olt, %6, %9 : vector<8x128xf32>
    %11 = arith.ori %8, %10 : vector<8x128xi1>
    %12 = arith.extui %8 : vector<8x128xi1> to vector<8x128xi32>
    %13 = arith.sitofp %12 : vector<8x128xi32> to vector<8x128xf32>
    %14 = arith.extui %10 : vector<8x128xi1> to vector<8x128xi32>
    %15 = arith.sitofp %14 : vector<8x128xi32> to vector<8x128xf32>
    %cst_7 = arith.constant 0.000000e+00 : f32
    %16 = vector.broadcast %cst_7 : f32 to vector<8x128xf32>
    %17 = arith.subf %16, %4 : vector<8x128xf32>
    %18 = math.exp %17 : vector<8x128xf32>
    %cst_8 = arith.constant 1.000000e+00 : f32
    %19 = vector.broadcast %cst_8 : f32 to vector<8x128xf32>
    %20 = arith.addf %19, %18 : vector<8x128xf32>
    %cst_9 = arith.constant 1.000000e+00 : f32
    %21 = vector.broadcast %cst_9 : f32 to vector<8x128xf32>
    %22 = arith.divf %21, %20 : vector<8x128xf32>
    %cst_10 = arith.constant 1.000000e+00 : f32
    %23 = vector.broadcast %cst_10 : f32 to vector<8x128xf32>
    %24 = arith.addf %6, %23 : vector<8x128xf32>
    %25 = arith.select %8, %6, %24 : vector<8x128xi1>, vector<8x128xf32>
    %cst_11 = arith.constant 5.000000e-01 : f32
    %26 = vector.broadcast %cst_11 : f32 to vector<8x128xf32>
    %27 = arith.select %11, %25, %26 : vector<8x128xi1>, vector<8x128xf32>
    %28 = arith.mulf %22, %27 : vector<8x128xf32>
    %cst_12 = arith.constant 1.000000e+00 : f32
    %29 = vector.broadcast %cst_12 : f32 to vector<8x128xf32>
    %30 = arith.subf %29, %22 : vector<8x128xf32>
    %cst_13 = arith.constant 1.000000e+00 : f32
    %31 = vector.broadcast %cst_13 : f32 to vector<8x128xf32>
    %32 = arith.subf %31, %27 : vector<8x128xf32>
    %33 = arith.mulf %30, %32 : vector<8x128xf32>
    %34 = arith.addf %28, %33 : vector<8x128xf32>
    %cst_14 = arith.constant 1.000000e+00 : f32
    %35 = vector.broadcast %cst_14 : f32 to vector<8x128xf32>
    %36 = arith.select %11, %34, %35 : vector<8x128xi1>, vector<8x128xf32>
    %cst_15 = arith.constant 9.99999991E-38 : f32
    %37 = vector.broadcast %cst_15 : f32 to vector<8x128xf32>
    %38 = arith.maximumf %36, %37 : vector<8x128xf32>
    %39 = math.log %38 : vector<8x128xf32>
    %cst_16 = arith.constant 5.000000e-01 : f32
    %40 = vector.broadcast %cst_16 : f32 to vector<8x128xf32>
    %41 = arith.mulf %40, %27 : vector<8x128xf32>
    %cst_17 = arith.constant 1.000000e+00 : f32
    %42 = vector.broadcast %cst_17 : f32 to vector<8x128xf32>
    %43 = arith.subf %42, %27 : vector<8x128xf32>
    %cst_18 = arith.constant 5.000000e-01 : f32
    %44 = vector.broadcast %cst_18 : f32 to vector<8x128xf32>
    %45 = arith.mulf %44, %43 : vector<8x128xf32>
    %46 = arith.addf %41, %45 : vector<8x128xf32>
    %cst_19 = arith.constant 1.000000e+00 : f32
    %47 = vector.broadcast %cst_19 : f32 to vector<8x128xf32>
    %48 = arith.subf %47, %36 : vector<8x128xf32>
    %49 = arith.mulf %48, %48 : vector<8x128xf32>
    %cst_20 = arith.constant 0.000000e+00 : f32
    %50 = vector.broadcast %cst_20 : f32 to vector<8x128xf32>
    %51 = arith.subf %50, %49 : vector<8x128xf32>
    %52 = arith.mulf %51, %39 : vector<8x128xf32>
    %53 = arith.mulf %52, %46 : vector<8x128xf32>
    %54 = arith.mulf %53, %13 : vector<8x128xf32>
    %55 = vector.shape_cast %54 : vector<8x128xf32> to vector<1x8x128xf32>
    %cst_21 = arith.constant dense<0.000000e+00> : vector<8x128xf32>
    %56 = vector.multi_reduction <add>, %55, %cst_21 [0] : vector<1x8x128xf32> to vector<8x128xf32>
    %c0_22 = arith.constant 0 : index
    %c0_23 = arith.constant 0 : index
    %57 = vector.load %arg4[%c0_22, %c0_23] : memref<80x128xf32, #tpu.memory_space<vmem>>, vector<8x128xf32>
    %58 = arith.addf %57, %56 : vector<8x128xf32>
    %c0_24 = arith.constant 0 : index
    %c0_25 = arith.constant 0 : index
    %59 = vector.load %arg4[%c0_24, %c0_25] : memref<80x128xf32, #tpu.memory_space<vmem>>, vector<8x128xf32>
    tpu.vector_store %arg4[%c0_24, %c0_25], %58 {strides = array<i32>} : memref<80x128xf32, #tpu.memory_space<vmem>>, vector<8x128xf32>,
    %60 = arith.mulf %53, %15 : vector<8x128xf32>
    %61 = vector.shape_cast %60 : vector<8x128xf32> to vector<1x8x128xf32>
    %cst_26 = arith.constant dense<0.000000e+00> : vector<8x128xf32>
    %62 = vector.multi_reduction <add>, %61, %cst_26 [0] : vector<1x8x128xf32> to vector<8x128xf32>
    %c8 = arith.constant 8 : index
    %c0_27 = arith.constant 0 : index
    %63 = vector.load %arg4[%c8, %c0_27] : memref<80x128xf32, #tpu.memory_space<vmem>>, vector<8x128xf32>
    %64 = arith.addf %63, %62 : vector<8x128xf32>
    %c8_28 = arith.constant 8 : index
    %c0_29 = arith.constant 0 : index
    %65 = vector.load %arg4[%c8_28, %c0_29] : memref<80x128xf32, #tpu.memory_space<vmem>>, vector<8x128xf32>
    tpu.vector_store %arg4[%c8_28, %c0_29], %64 {strides = array<i32>} : memref<80x128xf32, #tpu.memory_space<vmem>>, vector<8x128xf32>,
    %c1 = arith.constant 1 : index
    %c0_30 = arith.constant 0 : index
    %c0_31 = arith.constant 0 : index
    %66 = vector.load %arg2[%c1, %c0_30, %c0_31] : memref<5x8x128xf32, #tpu.memory_space<vmem>>, vector<1x8x128xf32>
    %67 = vector.shape_cast %66 : vector<1x8x128xf32> to vector<8x128xf32>
    %c1_32 = arith.constant 1 : index
    %c0_33 = arith.constant 0 : index
    %c0_34 = arith.constant 0 : index
    %68 = vector.load %arg3[%c1_32, %c0_33, %c0_34] : memref<5x8x128xf32, #tpu.memory_space<vmem>>, vector<1x8x128xf32>
    %69 = vector.shape_cast %68 : vector<1x8x128xf32> to vector<8x128xf32>
    %70 = arith.subf %67, %69 : vector<8x128xf32>
    %71 = math.absf %70 : vector<8x128xf32>
    %cst_35 = arith.constant 1.000000e+00 : f32
    %72 = vector.broadcast %cst_35 : f32 to vector<8x128xf32>
    %73 = arith.cmpf olt, %71, %72 : vector<8x128xf32>
    %cst_36 = arith.constant 5.000000e-01 : f32
    %74 = vector.broadcast %cst_36 : f32 to vector<8x128xf32>
    %75 = arith.mulf %74, %70 : vector<8x128xf32>
    %76 = arith.mulf %75, %70 : vector<8x128xf32>
    %cst_37 = arith.constant 5.000000e-01 : f32
    %77 = vector.broadcast %cst_37 : f32 to vector<8x128xf32>
    %78 = arith.subf %71, %77 : vector<8x128xf32>
    %79 = arith.select %73, %76, %78 : vector<8x128xi1>, vector<8x128xf32>
    %80 = arith.mulf %79, %13 : vector<8x128xf32>
    %81 = vector.shape_cast %80 : vector<8x128xf32> to vector<1x8x128xf32>
    %cst_38 = arith.constant dense<0.000000e+00> : vector<8x128xf32>
    %82 = vector.multi_reduction <add>, %81, %cst_38 [0] : vector<1x8x128xf32> to vector<8x128xf32>
    %c16 = arith.constant 16 : index
    %c0_39 = arith.constant 0 : index
    %83 = vector.load %arg4[%c16, %c0_39] : memref<80x128xf32, #tpu.memory_space<vmem>>, vector<8x128xf32>
    %84 = arith.addf %83, %82 : vector<8x128xf32>
    %c16_40 = arith.constant 16 : index
    %c0_41 = arith.constant 0 : index
    %85 = vector.load %arg4[%c16_40, %c0_41] : memref<80x128xf32, #tpu.memory_space<vmem>>, vector<8x128xf32>
    tpu.vector_store %arg4[%c16_40, %c0_41], %84 {strides = array<i32>} : memref<80x128xf32, #tpu.memory_space<vmem>>, vector<8x128xf32>,
    %c2 = arith.constant 2 : index
    %c0_42 = arith.constant 0 : index
    %c0_43 = arith.constant 0 : index
    %86 = vector.load %arg2[%c2, %c0_42, %c0_43] : memref<5x8x128xf32, #tpu.memory_space<vmem>>, vector<1x8x128xf32>
    %87 = vector.shape_cast %86 : vector<1x8x128xf32> to vector<8x128xf32>
    %c2_44 = arith.constant 2 : index
    %c0_45 = arith.constant 0 : index
    %c0_46 = arith.constant 0 : index
    %88 = vector.load %arg3[%c2_44, %c0_45, %c0_46] : memref<5x8x128xf32, #tpu.memory_space<vmem>>, vector<1x8x128xf32>
    %89 = vector.shape_cast %88 : vector<1x8x128xf32> to vector<8x128xf32>
    %90 = arith.subf %87, %89 : vector<8x128xf32>
    %91 = math.absf %90 : vector<8x128xf32>
    %cst_47 = arith.constant 1.000000e+00 : f32
    %92 = vector.broadcast %cst_47 : f32 to vector<8x128xf32>
    %93 = arith.cmpf olt, %91, %92 : vector<8x128xf32>
    %cst_48 = arith.constant 5.000000e-01 : f32
    %94 = vector.broadcast %cst_48 : f32 to vector<8x128xf32>
    %95 = arith.mulf %94, %90 : vector<8x128xf32>
    %96 = arith.mulf %95, %90 : vector<8x128xf32>
    %cst_49 = arith.constant 5.000000e-01 : f32
    %97 = vector.broadcast %cst_49 : f32 to vector<8x128xf32>
    %98 = arith.subf %91, %97 : vector<8x128xf32>
    %99 = arith.select %93, %96, %98 : vector<8x128xi1>, vector<8x128xf32>
    %100 = arith.mulf %99, %13 : vector<8x128xf32>
    %101 = vector.shape_cast %100 : vector<8x128xf32> to vector<1x8x128xf32>
    %cst_50 = arith.constant dense<0.000000e+00> : vector<8x128xf32>
    %102 = vector.multi_reduction <add>, %101, %cst_50 [0] : vector<1x8x128xf32> to vector<8x128xf32>
    %c24 = arith.constant 24 : index
    %c0_51 = arith.constant 0 : index
    %103 = vector.load %arg4[%c24, %c0_51] : memref<80x128xf32, #tpu.memory_space<vmem>>, vector<8x128xf32>
    %104 = arith.addf %103, %102 : vector<8x128xf32>
    %c24_52 = arith.constant 24 : index
    %c0_53 = arith.constant 0 : index
    %105 = vector.load %arg4[%c24_52, %c0_53] : memref<80x128xf32, #tpu.memory_space<vmem>>, vector<8x128xf32>
    tpu.vector_store %arg4[%c24_52, %c0_53], %104 {strides = array<i32>} : memref<80x128xf32, #tpu.memory_space<vmem>>, vector<8x128xf32>,
    %c3 = arith.constant 3 : index
    %c0_54 = arith.constant 0 : index
    %c0_55 = arith.constant 0 : index
    %106 = vector.load %arg2[%c3, %c0_54, %c0_55] : memref<5x8x128xf32, #tpu.memory_space<vmem>>, vector<1x8x128xf32>
    %107 = vector.shape_cast %106 : vector<1x8x128xf32> to vector<8x128xf32>
    %c3_56 = arith.constant 3 : index
    %c0_57 = arith.constant 0 : index
    %c0_58 = arith.constant 0 : index
    %108 = vector.load %arg3[%c3_56, %c0_57, %c0_58] : memref<5x8x128xf32, #tpu.memory_space<vmem>>, vector<1x8x128xf32>
    %109 = vector.shape_cast %108 : vector<1x8x128xf32> to vector<8x128xf32>
    %110 = arith.subf %107, %109 : vector<8x128xf32>
    %111 = math.absf %110 : vector<8x128xf32>
    %cst_59 = arith.constant 1.000000e+00 : f32
    %112 = vector.broadcast %cst_59 : f32 to vector<8x128xf32>
    %113 = arith.cmpf olt, %111, %112 : vector<8x128xf32>
    %cst_60 = arith.constant 5.000000e-01 : f32
    %114 = vector.broadcast %cst_60 : f32 to vector<8x128xf32>
    %115 = arith.mulf %114, %110 : vector<8x128xf32>
    %116 = arith.mulf %115, %110 : vector<8x128xf32>
    %cst_61 = arith.constant 5.000000e-01 : f32
    %117 = vector.broadcast %cst_61 : f32 to vector<8x128xf32>
    %118 = arith.subf %111, %117 : vector<8x128xf32>
    %119 = arith.select %113, %116, %118 : vector<8x128xi1>, vector<8x128xf32>
    %120 = arith.mulf %119, %13 : vector<8x128xf32>
    %121 = vector.shape_cast %120 : vector<8x128xf32> to vector<1x8x128xf32>
    %cst_62 = arith.constant dense<0.000000e+00> : vector<8x128xf32>
    %122 = vector.multi_reduction <add>, %121, %cst_62 [0] : vector<1x8x128xf32> to vector<8x128xf32>
    %c32 = arith.constant 32 : index
    %c0_63 = arith.constant 0 : index
    %123 = vector.load %arg4[%c32, %c0_63] : memref<80x128xf32, #tpu.memory_space<vmem>>, vector<8x128xf32>
    %124 = arith.addf %123, %122 : vector<8x128xf32>
    %c32_64 = arith.constant 32 : index
    %c0_65 = arith.constant 0 : index
    %125 = vector.load %arg4[%c32_64, %c0_65] : memref<80x128xf32, #tpu.memory_space<vmem>>, vector<8x128xf32>
    tpu.vector_store %arg4[%c32_64, %c0_65], %124 {strides = array<i32>} : memref<80x128xf32, #tpu.memory_space<vmem>>, vector<8x128xf32>,
    %c4 = arith.constant 4 : index
    %c0_66 = arith.constant 0 : index
    %c0_67 = arith.constant 0 : index
    %126 = vector.load %arg2[%c4, %c0_66, %c0_67] : memref<5x8x128xf32, #tpu.memory_space<vmem>>, vector<1x8x128xf32>
    %127 = vector.shape_cast %126 : vector<1x8x128xf32> to vector<8x128xf32>
    %c4_68 = arith.constant 4 : index
    %c0_69 = arith.constant 0 : index
    %c0_70 = arith.constant 0 : index
    %128 = vector.load %arg3[%c4_68, %c0_69, %c0_70] : memref<5x8x128xf32, #tpu.memory_space<vmem>>, vector<1x8x128xf32>
    %129 = vector.shape_cast %128 : vector<1x8x128xf32> to vector<8x128xf32>
    %130 = arith.subf %127, %129 : vector<8x128xf32>
    %131 = math.absf %130 : vector<8x128xf32>
    %cst_71 = arith.constant 1.000000e+00 : f32
    %132 = vector.broadcast %cst_71 : f32 to vector<8x128xf32>
    %133 = arith.cmpf olt, %131, %132 : vector<8x128xf32>
    %cst_72 = arith.constant 5.000000e-01 : f32
    %134 = vector.broadcast %cst_72 : f32 to vector<8x128xf32>
    %135 = arith.mulf %134, %130 : vector<8x128xf32>
    %136 = arith.mulf %135, %130 : vector<8x128xf32>
    %cst_73 = arith.constant 5.000000e-01 : f32
    %137 = vector.broadcast %cst_73 : f32 to vector<8x128xf32>
    %138 = arith.subf %131, %137 : vector<8x128xf32>
    %139 = arith.select %133, %136, %138 : vector<8x128xi1>, vector<8x128xf32>
    %140 = arith.mulf %139, %13 : vector<8x128xf32>
    %141 = vector.shape_cast %140 : vector<8x128xf32> to vector<1x8x128xf32>
    %cst_74 = arith.constant dense<0.000000e+00> : vector<8x128xf32>
    %142 = vector.multi_reduction <add>, %141, %cst_74 [0] : vector<1x8x128xf32> to vector<8x128xf32>
    %c40 = arith.constant 40 : index
    %c0_75 = arith.constant 0 : index
    %143 = vector.load %arg4[%c40, %c0_75] : memref<80x128xf32, #tpu.memory_space<vmem>>, vector<8x128xf32>
    %144 = arith.addf %143, %142 : vector<8x128xf32>
    %c40_76 = arith.constant 40 : index
    %c0_77 = arith.constant 0 : index
    %145 = vector.load %arg4[%c40_76, %c0_77] : memref<80x128xf32, #tpu.memory_space<vmem>>, vector<8x128xf32>
    tpu.vector_store %arg4[%c40_76, %c0_77], %144 {strides = array<i32>} : memref<80x128xf32, #tpu.memory_space<vmem>>, vector<8x128xf32>,
    %146 = vector.shape_cast %13 : vector<8x128xf32> to vector<1x8x128xf32>
    %cst_78 = arith.constant dense<0.000000e+00> : vector<8x128xf32>
    %147 = vector.multi_reduction <add>, %146, %cst_78 [0] : vector<1x8x128xf32> to vector<8x128xf32>
    %c48 = arith.constant 48 : index
    %c0_79 = arith.constant 0 : index
    %148 = vector.load %arg4[%c48, %c0_79] : memref<80x128xf32, #tpu.memory_space<vmem>>, vector<8x128xf32>
    %149 = arith.addf %148, %147 : vector<8x128xf32>
    %c48_80 = arith.constant 48 : index
    %c0_81 = arith.constant 0 : index
    %150 = vector.load %arg4[%c48_80, %c0_81] : memref<80x128xf32, #tpu.memory_space<vmem>>, vector<8x128xf32>
    tpu.vector_store %arg4[%c48_80, %c0_81], %149 {strides = array<i32>} : memref<80x128xf32, #tpu.memory_space<vmem>>, vector<8x128xf32>,
    %151 = vector.shape_cast %15 : vector<8x128xf32> to vector<1x8x128xf32>
    %cst_82 = arith.constant dense<0.000000e+00> : vector<8x128xf32>
    %152 = vector.multi_reduction <add>, %151, %cst_82 [0] : vector<1x8x128xf32> to vector<8x128xf32>
    %c56 = arith.constant 56 : index
    %c0_83 = arith.constant 0 : index
    %153 = vector.load %arg4[%c56, %c0_83] : memref<80x128xf32, #tpu.memory_space<vmem>>, vector<8x128xf32>
    %154 = arith.addf %153, %152 : vector<8x128xf32>
    %c56_84 = arith.constant 56 : index
    %c0_85 = arith.constant 0 : index
    %155 = vector.load %arg4[%c56_84, %c0_85] : memref<80x128xf32, #tpu.memory_space<vmem>>, vector<8x128xf32>
    tpu.vector_store %arg4[%c56_84, %c0_85], %154 {strides = array<i32>} : memref<80x128xf32, #tpu.memory_space<vmem>>, vector<8x128xf32>,
    %cst_86 = arith.constant 0.000000e+00 : f32
    %156 = vector.broadcast %cst_86 : f32 to vector<8x128xf32>
    %157 = arith.cmpf oge, %4, %156 : vector<8x128xf32>
    %158 = arith.andi %8, %157 : vector<8x128xi1>
    %159 = arith.extui %158 : vector<8x128xi1> to vector<8x128xi32>
    %160 = arith.sitofp %159 : vector<8x128xi32> to vector<8x128xf32>
    %161 = vector.shape_cast %160 : vector<8x128xf32> to vector<1x8x128xf32>
    %cst_87 = arith.constant dense<0.000000e+00> : vector<8x128xf32>
    %162 = vector.multi_reduction <add>, %161, %cst_87 [0] : vector<1x8x128xf32> to vector<8x128xf32>
    %c64 = arith.constant 64 : index
    %c0_88 = arith.constant 0 : index
    %163 = vector.load %arg4[%c64, %c0_88] : memref<80x128xf32, #tpu.memory_space<vmem>>, vector<8x128xf32>
    %164 = arith.addf %163, %162 : vector<8x128xf32>
    %c64_89 = arith.constant 64 : index
    %c0_90 = arith.constant 0 : index
    %165 = vector.load %arg4[%c64_89, %c0_90] : memref<80x128xf32, #tpu.memory_space<vmem>>, vector<8x128xf32>
    tpu.vector_store %arg4[%c64_89, %c0_90], %164 {strides = array<i32>} : memref<80x128xf32, #tpu.memory_space<vmem>>, vector<8x128xf32>,
    %cst_91 = arith.constant dense<true> : vector<8x128xi1>
    %166 = arith.xori %157, %cst_91 : vector<8x128xi1>
    %167 = arith.andi %10, %166 : vector<8x128xi1>
    %168 = arith.extui %167 : vector<8x128xi1> to vector<8x128xi32>
    %169 = arith.sitofp %168 : vector<8x128xi32> to vector<8x128xf32>
    %170 = vector.shape_cast %169 : vector<8x128xf32> to vector<1x8x128xf32>
    %cst_92 = arith.constant dense<0.000000e+00> : vector<8x128xf32>
    %171 = vector.multi_reduction <add>, %170, %cst_92 [0] : vector<1x8x128xf32> to vector<8x128xf32>
    %c72 = arith.constant 72 : index
    %c0_93 = arith.constant 0 : index
    %172 = vector.load %arg4[%c72, %c0_93] : memref<80x128xf32, #tpu.memory_space<vmem>>, vector<8x128xf32>
    %173 = arith.addf %172, %171 : vector<8x128xf32>
    %c72_94 = arith.constant 72 : index
    %c0_95 = arith.constant 0 : index
    %174 = vector.load %arg4[%c72_94, %c0_95] : memref<80x128xf32, #tpu.memory_space<vmem>>, vector<8x128xf32>
    tpu.vector_store %arg4[%c72_94, %c0_95], %173 {strides = array<i32>} : memref<80x128xf32, #tpu.memory_space<vmem>>, vector<8x128xf32>,
    return
  }
  func.func @transform_0(%arg0: i32, %arg1: i32) -> (i32, i32, i32) {
    %c1_i32 = arith.constant 1 : i32
    %0 = arith.muli %arg0, %c1_i32 : i32
    %1 = arith.addi %0, %arg1 : i32
    %c0_i32 = arith.constant 0 : i32
    %c0_i32_0 = arith.constant 0 : i32
    %c0_i32_1 = arith.constant 0 : i32
    return %c0_i32, %1, %c0_i32_0 : i32, i32, i32
  }
  func.func @transform_1(%arg0: i32, %arg1: i32) -> (i32, i32, i32) {
    %c1_i32 = arith.constant 1 : i32
    %0 = arith.muli %arg0, %c1_i32 : i32
    %1 = arith.addi %0, %arg1 : i32
    %c0_i32 = arith.constant 0 : i32
    %c0_i32_0 = arith.constant 0 : i32
    %c0_i32_1 = arith.constant 0 : i32
    return %c0_i32, %1, %c0_i32_0 : i32, i32, i32
  }
  func.func @transform_2(%arg0: i32, %arg1: i32) -> (i32, i32) {
    %c0_i32 = arith.constant 0 : i32
    %c0_i32_0 = arith.constant 0 : i32
    return %arg0, %c0_i32 : i32, i32
  }
}

</mosaic_0001>

<llo_original>
// kernel: tpu_custom_call.1
$region0: #{tpu_custom_call.1}
  #allocation0 [shape = 'u32[]', space=smem, size = 0x4, offset = 0x4, fixed_abs, tag = 'smem constant byte address 0x4 - core index']
  #allocation1 [shape = 'u32[144,128]{1,0:T(1,128)}', space=vmem, size = 0x12000, scoped, tag = 'internal scratch']
  %s0 = inlined_call_operand.hbm [shape: f32[5,16,128], index: 0, kind: input, shape index: {}]
  %s1 = inlined_call_operand.hbm [shape: f32[5,16,128], index: 1, kind: input, shape index: {}]
  %s2 = inlined_call_operand.hbm [shape: f32[160,128], index: 2, kind: output, shape index: {}]
  %s3 = sld [smem:[#allocation0]]
  $region53: #{tpu_custom_call.1} parent=0
    _
  %s5 = ssub.s32 1, %s3
  %s6 = scalar_select 0, %s5, %s3
  $region1: #{tpu_custom_call.1} parent=0
    #allocation2 [shape = 'u8[40960]{0}', space=vmem, size = 0xa000, scoped, tag = 'input window, operand 0']
    #allocation3 [shape = 's32[2]{0}', space=sflag, size = 0x8, scoped, tag = 'scoped memory for tpu_custom_call.1']
    #allocation4 [shape = 's32[2]{0}', space=sflag, size = 0x8, scoped, tag = 'scoped memory for tpu_custom_call.1']
    #allocation5 [shape = 'u8[40960]{0}', space=vmem, size = 0xa000, scoped, tag = 'input window, operand 1']
    #allocation6 [shape = 's32[2]{0}', space=sflag, size = 0x8, scoped, tag = 'scoped memory for tpu_custom_call.1']
    #allocation7 [shape = 'u8[81920]{0}', space=vmem, size = 0x14000, scoped, tag = 'output window, operand 0']
    %7 = vsyncpa [#allocation3], 0
    %s8 = scalar_lea.sflag [#allocation3], 1
    %9 = vsyncpa %s8, 0
    %10 = vsyncpa [#allocation6], 0
    %s11 = scalar_lea.sflag [#allocation6], 1
    %12 = vsyncpa %s11, 0
    %13 = vsyncpa [#allocation4], 0
    %s14 = scalar_lea.sflag [#allocation4], 1
    %15 = vsyncpa %s14, 0
    loop: start=0, step=1, limit=4
    $region2: #{tpu_custom_call.1} parent=1 // loop_pre_header
      _
    $region3: #{tpu_custom_call.1} parent=1 // loop_header
      %s17 = sphi 0, %s21
      %p18 = scmp.ge.s32.totalorder %s17, 4
      %s24 = sphi 0, %s36
      %s25 = sphi 0, %s32
      %s26 = sphi 0, %s24
      %s27 = sphi 0, %s25
      %s28 = sphi 0, %s26
      %s29 = sphi 0, %s27
      %s41 = sphi 0, %s43
      %s44 = sphi 0, %s41
      %s45 = sphi 0, %s44
      %s61 = sphi 0, %s45
      %s69 = sphi 0, %s71
      %s72 = sphi 0, %s69
      %s73 = sphi 0, %s72
      %s89 = sphi 0, %s73
      %s95 = sphi 0, %s97
      %s98 = sphi 0, %s95
      %s99 = sphi 0, %s98
      %s115 = sphi 0, %s99
    $region4: #{tpu_custom_call.1} parent=1 // loop_header_branch
      %20 = sbr.rel (%p18) target = $region8
    $region5: #{tpu_custom_call.1} parent=1 // loop_body
      %s22 = ssub.s32 %s17, 1
      %s23 = ssub.s32 %s17, 2
      %s30 = sadd.s32 1, %s25
      %p31 = scmp.ge.s32.totalorder %s30, 1
      %s32 = scalar_select %p31, 0, %s30
      %s33 = sadd.s32 1, %s24
      %s34 = scalar_select %p31, %s33, %s24
      %p35 = scmp.ge.s32.totalorder %s34, 2
      %s36 = scalar_select %p35, 0, %s34
      %s37 = sadd.s32 %s24, %s25
      %s38 = sadd.s32 %s36, %s32
      %s39 = ssub.s32 %s37, %s38
      %p40 = scmp.eq.s32.totalorder %s39, 0
      %s42 = sadd.s32 %s41, 1
      %s43 = scalar_select %p40, %s41, %s42
      %p46 = pneg %p40
      %p47 = scmp.eq.s32.totalorder %s17, 1
      %p48 = por %p46, %p47
      %p49 = scmp.ne.s32.totalorder %s41, %s44
      %p50 = scmp.eq.s32.totalorder %s17, 0
      %p51 = por %p49, %p50
      %p52 = scmp.ne.s32.totalorder %s41, %s44
      %p53 = scmp.eq.s32.totalorder %s22, 1
      %p54 = por %p52, %p53
      %p55 = scmp.ne.s32.totalorder %s44, %s45
      %p56 = scmp.eq.s32.totalorder %s22, 0
      %p57 = por %p55, %p56
      %p58 = scmp.ne.s32.totalorder %s44, %s45
      %p59 = scmp.eq.s32.totalorder %s23, 1
      %p60 = por %p58, %p59
      %p62 = scmp.ne.s32.totalorder %s45, %s61
      %p63 = scmp.eq.s32.totalorder %s23, 0
      %p64 = por %p62, %p63
      %s65 = sadd.s32 %s24, %s25
      %s66 = sadd.s32 %s36, %s32
      %s67 = ssub.s32 %s65, %s66
      %p68 = scmp.eq.s32.totalorder %s67, 0
      %s70 = sadd.s32 %s69, 1
      %s71 = scalar_select %p68, %s69, %s70
      %p74 = pneg %p68
      %p75 = scmp.eq.s32.totalorder %s17, 1
      %p76 = por %p74, %p75
      %p77 = scmp.ne.s32.totalorder %s69, %s72
      %p78 = scmp.eq.s32.totalorder %s17, 0
      %p79 = por %p77, %p78
      %p80 = scmp.ne.s32.totalorder %s69, %s72
      %p81 = scmp.eq.s32.totalorder %s22, 1
      %p82 = por %p80, %p81
      %p83 = scmp.ne.s32.totalorder %s72, %s73
      %p84 = scmp.eq.s32.totalorder %s22, 0
      %p85 = por %p83, %p84
      %p86 = scmp.ne.s32.totalorder %s72, %s73
      %p87 = scmp.eq.s32.totalorder %s23, 1
      %p88 = por %p86, %p87
      %p90 = scmp.ne.s32.totalorder %s73, %s89
      %p91 = scmp.eq.s32.totalorder %s23, 0
      %p92 = por %p90, %p91
      %s93 = ssub.s32 %s24, %s36
      %p94 = scmp.eq.s32.totalorder %s93, 0
      %s96 = sadd.s32 %s95, 1
      %s97 = scalar_select %p94, %s95, %s96
      %p100 = pneg %p94
      %p101 = scmp.eq.s32.totalorder %s17, 1
      %p102 = por %p100, %p101
      %p103 = scmp.ne.s32.totalorder %s95, %s98
      %p104 = scmp.eq.s32.totalorder %s17, 0
      %p105 = por %p103, %p104
      %p106 = scmp.ne.s32.totalorder %s95, %s98
      %p107 = scmp.eq.s32.totalorder %s22, 1
      %p108 = por %p106, %p107
      %p109 = scmp.ne.s32.totalorder %s98, %s99
      %p110 = scmp.eq.s32.totalorder %s22, 0
      %p111 = por %p109, %p110
      %p112 = scmp.ne.s32.totalorder %s98, %s99
      %p113 = scmp.eq.s32.totalorder %s23, 1
      %p114 = por %p112, %p113
      %p116 = scmp.ne.s32.totalorder %s99, %s115
      %p117 = scmp.eq.s32.totalorder %s23, 0
      %p118 = por %p116, %p117
      %p119 = scmp.le.s32.totalorder 1, %s17
      %p120 = scmp.lt.s32.totalorder %s17, 3
      %p121 = pnand %p119, %p120
      %p122 = pneg %p121
      // Predicated region
      $region9: #{tpu_custom_call.1} parent=5 // pred_check
        _
      $region10: #{tpu_custom_call.1} parent=5 // pred_check_branch
        %124 = sbr.rel (%p121) target = $region12
      $region11: #{tpu_custom_call.1} parent=5 // pred_region
        %s125 = ssub.s32 %s17, 1
      $region12: #{tpu_custom_call.1} parent=5 // pred_fallthru
        _
      %p126 = scmp.lt.s32.totalorder %s17, 2
      // Predicated region
      $region13: #{tpu_custom_call.1} parent=5 // pred_check
        %p127 = pneg %p126
      $region14: #{tpu_custom_call.1} parent=5 // pred_check_branch
        %129 = sbr.rel (%p127) target = $region16
      $region15: #{tpu_custom_call.1} parent=5 // pred_region
        // Predicated region
        $region17: #{tpu_custom_call.1} parent=15 // pred_check
          %p130 = pneg %p51
        $region18: #{tpu_custom_call.1} parent=15 // pred_check_branch
          %132 = sbr.rel (%p130) target = $region20
        $region19: #{tpu_custom_call.1} parent=15 // pred_region
          %s133 = sand.u32 %s41, 1
          %s134 = scalar_lea.sflag [#allocation3], %s133
          %s135 = sand.u32 %s41, 1
          %s136 = smul.addr %s135, 40
          %s137 = scalar_lea.vmem [#allocation2], %s136
          %s138 = sadd.s32 %s24, %s25
          %s140 = ssub.s32 640, 640
          %141 = vsyncadd %s134, %s140
          %s142 = smul.addr %s138, 128
          %s143 = scalar_lea.hbm %s0, %s142
          %s144 = sshll.u32 %s137, 4
          %s145 = int_to_ptr.vmem [resolvable:$true] %s144
          %150 = dma.hbm_to_vmem [thread:$0]  %s143, 640, %s145, %s134, 256, 128, 8
        $region20: #{tpu_custom_call.1} parent=15 // pred_fallthru
          _
        // Predicated region
        $region21: #{tpu_custom_call.1} parent=15 // pred_check
          %p151 = pneg %p79
        $region22: #{tpu_custom_call.1} parent=15 // pred_check_branch
          %153 = sbr.rel (%p151) target = $region24
        $region23: #{tpu_custom_call.1} parent=15 // pred_region
          %s154 = sand.u32 %s69, 1
          %s155 = scalar_lea.sflag [#allocation6], %s154
          %s156 = sand.u32 %s69, 1
          %s157 = smul.addr %s156, 40
          %s158 = scalar_lea.vmem [#allocation5], %s157
          %s159 = sadd.s32 %s24, %s25
          %s161 = ssub.s32 640, 640
          %162 = vsyncadd %s155, %s161
          %s163 = smul.addr %s159, 128
          %s164 = scalar_lea.hbm %s1, %s163
          %s165 = sshll.u32 %s158, 4
          %s166 = int_to_ptr.vmem [resolvable:$true] %s165
          %171 = dma.hbm_to_vmem [thread:$0]  %s164, 640, %s166, %s155, 256, 128, 8
        $region24: #{tpu_custom_call.1} parent=15 // pred_fallthru
          _
      $region16: #{tpu_custom_call.1} parent=5 // pred_fallthru
        _
      %p172 = scmp.le.s32.totalorder 1, %s17
      %p173 = scmp.lt.s32.totalorder %s17, 3
      %p174 = pnand %p172, %p173
      %p175 = pneg %p174
      // Predicated region
      $region25: #{tpu_custom_call.1} parent=5 // pred_check
        _
      $region26: #{tpu_custom_call.1} parent=5 // pred_check_branch
        %177 = sbr.rel (%p174) target = $region28
      $region27: #{tpu_custom_call.1} parent=5 // pred_region
        %s178 = ssub.s32 %s17, 1
        %s179 = sand.u32 %s44, 1
        %s180 = scalar_lea.sflag [#allocation3], %s179
        %s181 = sand.u32 %s44, 1
        %s182 = smul.addr %s181, 40
        %s183 = scalar_lea.vmem [#allocation2], %s182
        // Predicated region
        $region29: #{tpu_custom_call.1} parent=27 // pred_check
          %p184 = pneg %p57
        $region30: #{tpu_custom_call.1} parent=27 // pred_check_branch
          %186 = sbr.rel (%p184) target = $region32
        $region31: #{tpu_custom_call.1} parent=27 // pred_region
          %187 = dma.done %s180, 640
        $region32: #{tpu_custom_call.1} parent=27 // pred_fallthru
          _
        %s188 = sand.u32 %s72, 1
        %s189 = scalar_lea.sflag [#allocation6], %s188
        %s190 = sand.u32 %s72, 1
        %s191 = smul.addr %s190, 40
        %s192 = scalar_lea.vmem [#allocation5], %s191
        // Predicated region
        $region33: #{tpu_custom_call.1} parent=27 // pred_check
          %p193 = pneg %p85
        $region34: #{tpu_custom_call.1} parent=27 // pred_check_branch
          %195 = sbr.rel (%p193) target = $region36
        $region35: #{tpu_custom_call.1} parent=27 // pred_region
          %196 = dma.done %s189, 640
        $region36: #{tpu_custom_call.1} parent=27 // pred_fallthru
          _
        %s197 = sand.u32 %s44, 1
        %s198 = scalar_lea.sflag [#allocation3], %s197
        %s199 = sand.u32 %s44, 1
        %s200 = smul.addr %s199, 40
        %s201 = scalar_lea.vmem [#allocation2], %s200
        %p202 = pneg %p57
        %p203 = pneg %p54
        %s204 = sand.u32 %s72, 1
        %s205 = scalar_lea.sflag [#allocation6], %s204
        %s206 = sand.u32 %s72, 1
        %s207 = smul.addr %s206, 40
        %s208 = scalar_lea.vmem [#allocation5], %s207
        %p209 = pneg %p85
        %p210 = pneg %p82
        %p211 = pneg %p111
        %p212 = pneg %p108
        %s213 = sand.u32 %s98, 1
        %s214 = scalar_lea.sflag [#allocation4], %s213
        %s215 = sand.u32 %s98, 1
        %s216 = smul.addr %s215, 80
        %s217 = scalar_lea.vmem [#allocation7], %s216
        %s218 = sadd.s32 %s26, %s27
        %s219 = sadd.s32 %s26, %s27
        %s220 = smul.u32 10, %s26
        %p221 = scmp.eq.s32.totalorder %s27, 0
        // Predicated region
        $region37: #{tpu_custom_call.1} parent=27 // pred_check
          %p222 = pneg %p221
        $region38: #{tpu_custom_call.1} parent=27 // pred_check_branch
          %224 = sbr.rel (%p222) target = $region40
        $region39: #{tpu_custom_call.1} parent=27 // pred_region
          %225 = vst [vmem:[%s217] sm:$0xff] 0.0
          %226 = vst [vmem:[%s217 + $0x8] sm:$0xff] 0.0
          %227 = vst [vmem:[%s217 + $0x10] sm:$0xff] 0.0
          %228 = vst [vmem:[%s217 + $0x18] sm:$0xff] 0.0
          %229 = vst [vmem:[%s217 + $0x20] sm:$0xff] 0.0
          %230 = vst [vmem:[%s217 + $0x28] sm:$0xff] 0.0
          %231 = vst [vmem:[%s217 + $0x30] sm:$0xff] 0.0
          %232 = vst [vmem:[%s217 + $0x38] sm:$0xff] 0.0
          %233 = vst [vmem:[%s217 + $0x40] sm:$0xff] 0.0
          %234 = vst [vmem:[%s217 + $0x48] sm:$0xff] 0.0
        $region40: #{tpu_custom_call.1} parent=27 // pred_fallthru
          _
        %v235 = vld [vmem:[%s183] sm:$0xff]
        %v236 = vld [vmem:[%s192] sm:$0xff]
        %vm237 = vcmp.gt.f32.partialorder %v236, 0.5
        %vm238 = vcmp.lt.f32.partialorder %v236, -0.5
        %vm239 = vmor %vm237, %vm238
        %v240 = vsel %vm237, 1, 0
        %v241 = vcvt.s32.f32 %v240
        %v242 = vsel %vm238, 1, 0
        %v243 = vcvt.s32.f32 %v242
        %v244 = vsub.f32 0.0, %v235
        %v245 = vmul.f32 %v244, 1.442695
        %v246 = vpow.pop %v245
        %v247 = vadd.f32 %v246, 1.0
        %v248 = vrcp.pop %v247
        %v249 = vmul.f32 1.0, %v248
        %v250 = vadd.f32 %v236, 1.0
        %v251 = vsel %vm237, %v236, %v250
        %v252 = vsel %vm239, %v251, 0.5
        %v253 = vmul.f32 %v249, %v252
        %v254 = vsub.f32 1.0, %v249
        %v255 = vsub.f32 1.0, %v252
        %v256 = vmul.f32 %v254, %v255
        %v257 = vadd.f32 %v253, %v256
        %v258 = vsel %vm239, %v257, 1.0
        %v259 = vmax.f32 %v258, 1e-37
        %v260 = vlog2.pop %v259
        %v261 = vmul.f32 %v260, 0.6931472
        %v262 = vmul.f32 %v252, 0.5
        %v263 = vmul.f32 %v255, 0.5
        %v264 = vadd.f32 %v262, %v263
        %v265 = vsub.f32 1.0, %v258
        %v266 = vmul.f32 %v265, %v265
        %v267 = vsub.f32 0.0, %v266
        %v268 = vmul.f32 %v267, %v261
        %v269 = vmul.f32 %v268, %v264
        %v270 = vmul.f32 %v269, %v241
        %v271 = vadd.f32 %v270, 0.0
        %v272 = vld [vmem:[%s217] sm:$0xff]
        %v273 = vadd.f32 %v272, %v271
        %274 = vst [vmem:[%s217] sm:$0xff] %v273
        %v275 = vmul.f32 %v269, %v243
        %v276 = vadd.f32 %v275, 0.0
        %v277 = vld [vmem:[%s217 + $0x8] sm:$0xff]
        %v278 = vadd.f32 %v277, %v276
        %279 = vst [vmem:[%s217 + $0x8] sm:$0xff] %v278
        %s280 = scalar_lea.vmem %s183, 8 [#allocation2]
        %v281 = vld [vmem:[%s280] sm:$0xff]
        %s282 = scalar_lea.vmem %s192, 8 [#allocation5]
        %v283 = vld [vmem:[%s282] sm:$0xff]
        %v284 = vsub.f32 %v281, %v283
        %v285 = vand.u32 2147483647, %v284
        %vm286 = vcmp.lt.f32.partialorder %v285, 1.0
        %v287 = vmul.f32 %v284, 0.5
        %v288 = vmul.f32 %v287, %v284
        %v289 = vsub.f32 %v285, 0.5
        %v290 = vsel %vm286, %v288, %v289
        %v291 = vmul.f32 %v290, %v241
        %v292 = vadd.f32 %v291, 0.0
        %v293 = vld [vmem:[%s217 + $0x10] sm:$0xff]
        %v294 = vadd.f32 %v293, %v292
        %295 = vst [vmem:[%s217 + $0x10] sm:$0xff] %v294
        %s296 = scalar_lea.vmem %s183, 16 [#allocation2]
        %v297 = vld [vmem:[%s296] sm:$0xff]
        %s298 = scalar_lea.vmem %s192, 16 [#allocation5]
        %v299 = vld [vmem:[%s298] sm:$0xff]
        %v300 = vsub.f32 %v297, %v299
        %v301 = vand.u32 2147483647, %v300
        %vm302 = vcmp.lt.f32.partialorder %v301, 1.0
        %v303 = vmul.f32 %v300, 0.5
        %v304 = vmul.f32 %v303, %v300
        %v305 = vsub.f32 %v301, 0.5
        %v306 = vsel %vm302, %v304, %v305
        %v307 = vmul.f32 %v306, %v241
        %v308 = vadd.f32 %v307, 0.0
        %v309 = vld [vmem:[%s217 + $0x18] sm:$0xff]
        %v310 = vadd.f32 %v309, %v308
        %311 = vst [vmem:[%s217 + $0x18] sm:$0xff] %v310
        %s312 = scalar_lea.vmem %s183, 24 [#allocation2]
        %v313 = vld [vmem:[%s312] sm:$0xff]
        %s314 = scalar_lea.vmem %s192, 24 [#allocation5]
        %v315 = vld [vmem:[%s314] sm:$0xff]
        %v316 = vsub.f32 %v313, %v315
        %v317 = vand.u32 2147483647, %v316
        %vm318 = vcmp.lt.f32.partialorder %v317, 1.0
        %v319 = vmul.f32 %v316, 0.5
        %v320 = vmul.f32 %v319, %v316
        %v321 = vsub.f32 %v317, 0.5
        %v322 = vsel %vm318, %v320, %v321
        %v323 = vmul.f32 %v322, %v241
        %v324 = vadd.f32 %v323, 0.0
        %v325 = vld [vmem:[%s217 + $0x20] sm:$0xff]
        %v326 = vadd.f32 %v325, %v324
        %327 = vst [vmem:[%s217 + $0x20] sm:$0xff] %v326
        %s328 = scalar_lea.vmem %s183, 32 [#allocation2]
        %v329 = vld [vmem:[%s328] sm:$0xff]
        %s330 = scalar_lea.vmem %s192, 32 [#allocation5]
        %v331 = vld [vmem:[%s330] sm:$0xff]
        %v332 = vsub.f32 %v329, %v331
        %v333 = vand.u32 2147483647, %v332
        %vm334 = vcmp.lt.f32.partialorder %v333, 1.0
        %v335 = vmul.f32 %v332, 0.5
        %v336 = vmul.f32 %v335, %v332
        %v337 = vsub.f32 %v333, 0.5
        %v338 = vsel %vm334, %v336, %v337
        %v339 = vmul.f32 %v338, %v241
        %v340 = vadd.f32 %v339, 0.0
        %v341 = vld [vmem:[%s217 + $0x28] sm:$0xff]
        %v342 = vadd.f32 %v341, %v340
        %343 = vst [vmem:[%s217 + $0x28] sm:$0xff] %v342
        %v344 = vadd.f32 %v241, 0.0
        %v345 = vld [vmem:[%s217 + $0x30] sm:$0xff]
        %v346 = vadd.f32 %v345, %v344
        %347 = vst [vmem:[%s217 + $0x30] sm:$0xff] %v346
        %v348 = vadd.f32 %v243, 0.0
        %v349 = vld [vmem:[%s217 + $0x38] sm:$0xff]
        %v350 = vadd.f32 %v349, %v348
        %351 = vst [vmem:[%s217 + $0x38] sm:$0xff] %v350
        %vm352 = vcmp.ge.f32.partialorder %v235, 0.0
        %vm353 = vmand %vm237, %vm352
        %v354 = vsel %vm353, 1, 0
        %v355 = vcvt.s32.f32 %v354
        %v356 = vadd.f32 %v355, 0.0
        %v357 = vld [vmem:[%s217 + $0x40] sm:$0xff]
        %v358 = vadd.f32 %v357, %v356
        %359 = vst [vmem:[%s217 + $0x40] sm:$0xff] %v358
        %vm360 = vmxor %vm352, 1
        %vm361 = vmand %vm238, %vm360
        %v362 = vsel %vm361, 1, 0
        %v363 = vcvt.s32.f32 %v362
        %v364 = vadd.f32 %v363, 0.0
        %v365 = vld [vmem:[%s217 + $0x48] sm:$0xff]
        %v366 = vadd.f32 %v365, %v364
        %367 = vst [vmem:[%s217 + $0x48] sm:$0xff] %v366
        %s368 = sand.u32 %s98, 1
        %s369 = scalar_lea.sflag [#allocation4], %s368
        %s370 = sand.u32 %s98, 1
        %s371 = smul.addr %s370, 80
        %s372 = scalar_lea.vmem [#allocation7], %s371
        // Predicated region
        $region41: #{tpu_custom_call.1} parent=27 // pred_check
          %p373 = pneg %p108
        $region42: #{tpu_custom_call.1} parent=27 // pred_check_branch
          %375 = sbr.rel (%p373) target = $region44
        $region43: #{tpu_custom_call.1} parent=27 // pred_region
          %s376 = smul.u32 10, %s26
          %s378 = ssub.s32 1280, 1280
          %379 = vsyncadd %s369, %s378
          %s380 = smul.addr %s376, 128
          %s381 = scalar_lea.hbm %s2, %s380
          %s382 = sshll.u32 %s372, 4
          %s383 = int_to_ptr.vmem [resolvable:$true] %s382
          %388 = dma.vmem_to_hbm [thread:$0]  %s383, 1280, %s381, %s369, 128, 128, 8
        $region44: #{tpu_custom_call.1} parent=27 // pred_fallthru
          _
      $region28: #{tpu_custom_call.1} parent=5 // pred_fallthru
        _
      %p389 = scmp.le.s32.totalorder 2, %s17
      // Predicated region
      $region45: #{tpu_custom_call.1} parent=5 // pred_check
        %p390 = pneg %p389
      $region46: #{tpu_custom_call.1} parent=5 // pred_check_branch
        %392 = sbr.rel (%p390) target = $region48
      $region47: #{tpu_custom_call.1} parent=5 // pred_region
        %s393 = ssub.s32 %s17, 2
        // Predicated region
        $region49: #{tpu_custom_call.1} parent=47 // pred_check
          %p394 = pneg %p114
        $region50: #{tpu_custom_call.1} parent=47 // pred_check_branch
          %396 = sbr.rel (%p394) target = $region52
        $region51: #{tpu_custom_call.1} parent=47 // pred_region
          %s397 = sand.u32 %s99, 1
          %s398 = scalar_lea.sflag [#allocation4], %s397
          %s399 = sand.u32 %s99, 1
          %s400 = smul.addr %s399, 80
          %s401 = scalar_lea.vmem [#allocation7], %s400
          %402 = dma.done %s398, 1280
        $region52: #{tpu_custom_call.1} parent=47 // pred_fallthru
          _
      $region48: #{tpu_custom_call.1} parent=5 // pred_fallthru
        _
    $region6: #{tpu_custom_call.1} parent=1 // loop_footer
      %s21 = sadd.s32 1, %s17
    $region7: #{tpu_custom_call.1} parent=1 // loop_footer_branch
      %16 = sbr.rel target = $region3
    $region8: #{tpu_custom_call.1} parent=1 // loop_exit
      _
    %403 = vsyncpa [#allocation3], 1
    %s404 = scalar_lea.sflag [#allocation3], 1
    %405 = vsyncpa %s404, 1
    %406 = vsyncpa [#allocation6], 1
    %s407 = scalar_lea.sflag [#allocation6], 1
    %408 = vsyncpa %s407, 1
    %409 = vsyncpa [#allocation4], 1
    %s410 = scalar_lea.sflag [#allocation4], 1
    %411 = vsyncpa %s410, 1

</llo_original>
